<compile_context>
chip_gen: v7x
topology: tpu7x:2x2x1
jax: 0.10.0
libtpu: 0.0.40
codegen_flags: <defaults>
</compile_context>

<pallas_src>
import math
import numpy as np
import jax
import jax.numpy as jnp
from jax import lax
from jax.experimental import pallas as pl
from jax.experimental.pallas import tpu as pltpu

BN_EPS = 1e-5
DENOM_EPS = 1e-12
SUBLANE = 8
LANE = 128
VMEM_SPEC = pl.BlockSpec(memory_space=pltpu.MemorySpace.VMEM)


def _round_up(x, m):
    return ((x + m - 1) // m) * m


def _vmem_limit(estimate_bytes):
    # Explicit scoped-VMEM limit: v5e defaults to 16 MiB, v7x physical is 64 MiB.
    return int(min(max(2 * estimate_bytes + (2 << 20), 16 << 20), 40 << 20))


# ----------------------------------------------------------------------------
# Call 1: fused MLP (Linear + BN + ReLU)* -> packed Lorentz heads + d
# ----------------------------------------------------------------------------
def make_mlp_head_call(cfg, B, B_pad, n_layers, P):
    linear = cfg["linear"]
    num_osc = cfg["num_lorentz_osc"]
    normalize_input = cfg["normalize_input"]
    geob_lo, geob_hi = cfg["geoboundary"][0], cfg["geoboundary"][1]
    d_col = 3 * num_osc + 1          # free lane holding d in the packed slab
    inv_B = 1.0 / float(B)
    need_mask = (B != B_pad)         # trace-time constant: mask elided if padded-free

    def kernel(*refs):
        g_ref = refs[0]
        layer_refs = refs[1:1 + 2 * n_layers]
        w_head_ref = refs[1 + 2 * n_layers]
        b_head_ref = refs[2 + 2 * n_layers]
        small_ref = refs[3 + 2 * n_layers]

        if need_mask:
            row_mask = (lax.broadcasted_iota(jnp.int32, (B_pad, 1), 0)
                        < B).astype(jnp.float32)

        h = g_ref[...]
        for i in range(n_layers):
            w = layer_refs[2 * i][...]
            gb = layer_refs[2 * i + 1][...]          # (2, F): row0=gamma, row1=beta
            gamma, beta = gb[0:1, :], gb[1:2, :]
            # Linear bias omitted: training-mode BN mean subtraction cancels any
            # per-feature constant exactly.
            y = jnp.dot(h, w, preferred_element_type=jnp.float32)
            ym = y * row_mask if need_mask else y
            s1 = jnp.sum(ym, axis=0, keepdims=True)           # single-pass stats
            s2 = jnp.sum(ym * y, axis=0, keepdims=True)
            mean = s1 * inv_B
            var = s2 * inv_B - mean * mean                    # biased batch var
            scale = gamma * lax.rsqrt(var + BN_EPS)           # BN affine folded
            shift = beta - mean * scale
            h = jnp.maximum(y * scale + shift, 0.0)
        # Last layer already ReLU'd -> the reference's extra relu(out) is a no-op.

        # Packed heads: columns [w0 | wp | g | eps_inf | 0...], one MXU dot.
        head = jnp.maximum(
            jnp.dot(h, w_head_ref[...], preferred_element_type=jnp.float32)
            + b_head_ref[...], 0.0)                           # (B_pad, P)

        d = jnp.mean(g_ref[:, :4], axis=1, keepdims=True)     # (B_pad, 1)
        if normalize_input:
            d = d * 0.5 * (geob_hi - geob_lo) + 0.5 * (geob_hi + geob_lo)

        # Pack d into the free lane -> one lane-dense store.
        lane = lax.broadcasted_iota(jnp.int32, (B_pad, P), 1)
        small_ref[...] = jnp.where(lane == d_col, d, head)

    n_in = 3 + 2 * n_layers
    w_bytes = sum(linear[i] * linear[i + 1] + 2 * linear[i + 1]
                  for i in range(len(linear) - 1)) + linear[-1] * P + 2 * P
    act_bytes = B_pad * (linear[0] + P + 4 * max(linear))
    est = 4 * (w_bytes + act_bytes)
    return pl.pallas_call(
        kernel,
        out_shape=jax.ShapeDtypeStruct((B_pad, P), jnp.float32),
        in_specs=[VMEM_SPEC] * n_in,
        out_specs=VMEM_SPEC,
        compiler_params=pltpu.CompilerParams(vmem_limit_bytes=_vmem_limit(est)),
    )


# ----------------------------------------------------------------------------
# Call 2: Lorentz oscillator sum + spectra, gridded over batch tiles (parallel)
# ----------------------------------------------------------------------------
def make_spectra_call(cfg, B_pad, TB, P, S_pad):
    no = cfg["num_lorentz_osc"]
    four_pi_c = -0.0033 * 4.0 * math.pi

    def kernel(small_ref, w_ref, t_ref):
        head = small_ref[...]                                 # (TB, P)
        w = w_ref[...]                                        # (1, S_pad)
        # Hoisted sublane broadcasts (JAX does not CSE broadcast_in_dim).
        w_b = pl.broadcast_to(w, (TB, S_pad))
        w2_b = w_b * w_b

        eps_inf = head[:, 3 * no:3 * no + 1]                  # (TB, 1)
        d = head[:, 3 * no + 1:3 * no + 2]                    # (TB, 1)

        e1 = jnp.zeros((TB, S_pad), jnp.float32)
        e2a = jnp.zeros((TB, S_pad), jnp.float32)             # e2 / w accumulator
        # TODO(synk): for num_osc >~ 8, switch to lax.fori_loop(unroll=4) with
        # (e1, e2a) carries to bound vreg pressure.
        for k in range(no):
            w0k = head[:, k:k + 1]
            wpk = head[:, no + k:no + k + 1]
            gk = head[:, 2 * no + k:2 * no + k + 1]
            wp2 = wpk * wpk
            diff = w0k * w0k - w2_b
            denom = diff * diff + w2_b * (gk * gk) + DENOM_EPS
            inv = pl.reciprocal(denom, approx=True)           # EUP vrcp
            inv = inv * (2.0 - denom * inv)                   # one Newton step
            e1 = e1 + (wp2 * diff) * inv
            e2a = e2a + (wp2 * gk) * inv
        e1 = e1 + eps_inf
        e2 = w_b * e2a                                        # w factored out

        # principal sqrt of eps = e1 + i*e2 (e2 >= 0 by construction)
        r = jnp.sqrt(e1 * e1 + e2 * e2)
        n_re = jnp.sqrt(jnp.maximum((r + e1) * 0.5, 0.0))
        n_im = jnp.sqrt(jnp.maximum((r - e1) * 0.5, 0.0))

        absorb = jnp.exp(four_pi_c * (d * n_im) * w_b)
        t = (4.0 * n_re) * pl.reciprocal((n_re + 1.0) ** 2 + n_im * n_im,
                                         approx=True) * absorb
        t_ref[...] = t

    est = 4 * (2 * TB * P + 2 * S_pad + 12 * TB * S_pad)
    return pl.pallas_call(
        kernel,
        out_shape=jax.ShapeDtypeStruct((B_pad, S_pad), jnp.float32),
        grid=(B_pad // TB,),
        in_specs=[pl.BlockSpec((TB, P), lambda i: (i, 0)),
                  pl.BlockSpec((1, S_pad), lambda i: (0, 0))],
        out_specs=pl.BlockSpec((TB, S_pad), lambda i: (i, 0)),
        compiler_params=pltpu.CompilerParams(
            dimension_semantics=("parallel",),
            vmem_limit_bytes=_vmem_limit(est)),
    )


# ----------------------------------------------------------------------------
# Wrapper: pad batch / lanes, run the two fused kernels, slice outputs
# ----------------------------------------------------------------------------
def forward(G, params, cfg):
    if not cfg["use_lorentz"]:
        # TODO(synk): use_lorentz=False path (return raw MLP output) not implemented.
        raise NotImplementedError("use_lorentz=False path not implemented")

    B, d_in = G.shape
    num_osc = cfg["num_lorentz_osc"]
    num_spec = cfg["num_spec_points"]
    P = _round_up(3 * num_osc + 2, LANE)
    S_pad = params["w_freq"].shape[1]
    n_layers = len(params["mlp"])

    B_pad = _round_up(B, SUBLANE)
    TB = min(B_pad, 256)                     # batch tile for the spectra grid
    B_pad = _round_up(B_pad, TB)

    G_pad = jnp.zeros((B_pad, d_in), jnp.float32).at[:B].set(G)

    inputs = [G_pad]
    for (w, gb) in params["mlp"]:
        inputs += [w, gb]
    inputs += [params["w_head"], params["b_head"]]

    small = make_mlp_head_call(cfg, B, B_pad, n_layers, P)(*inputs)
    T = make_spectra_call(cfg, B_pad, TB, P, S_pad)(small, params["w_freq"])

    no = num_osc
    T = T[:B, :num_spec]
    w0 = small[:B, 0:no]
    wp = small[:B, no:2 * no]
    g = small[:B, 2 * no:3 * no]
    eps_inf = small[:B, 3 * no:3 * no + 1]
    d = small[:B, 3 * no + 1]
    return T, w0, wp, g, eps_inf, d


# ----------------------------------------------------------------------------
# Parameter construction (PyTorch nn.Linear / BatchNorm1d defaults)
# ----------------------------------------------------------------------------
def init_params(key, cfg):
    linear = cfg["linear"]
    num_osc = cfg["num_lorentz_osc"]
    hidden = linear[-1]
    P = _round_up(3 * num_osc + 2, LANE)

    def lin_init(k, fan_in, fan_out):
        bound = 1.0 / math.sqrt(fan_in)
        kw, kb = jax.random.split(k)
        w = jax.random.uniform(kw, (fan_in, fan_out), jnp.float32, -bound, bound)
        b = jax.random.uniform(kb, (fan_out,), jnp.float32, -bound, bound)
        return w, b

    params = {"mlp": []}
    keys = jax.random.split(key, len(linear) + 4)
    for i in range(len(linear) - 1):
        w, _b = lin_init(keys[i], linear[i], linear[i + 1])
        # _b dropped: training-mode BN mean subtraction cancels the Linear bias.
        gb = jnp.zeros((2, linear[i + 1]), jnp.float32).at[0].set(1.0)  # gamma, beta
        params["mlp"].append((w, gb))

    w_w0, _ = lin_init(keys[-4], hidden, num_osc)            # bias=False heads
    w_wp, _ = lin_init(keys[-3], hidden, num_osc)
    w_g, _ = lin_init(keys[-2], hidden, num_osc)
    w_eps, b_eps = lin_init(keys[-1], hidden, 1)

    # pack the four heads into a single zero-padded lane-dense slab
    w_head = jnp.zeros((hidden, P), jnp.float32)
    w_head = w_head.at[:, 0:num_osc].set(w_w0)
    w_head = w_head.at[:, num_osc:2 * num_osc].set(w_wp)
    w_head = w_head.at[:, 2 * num_osc:3 * num_osc].set(w_g)
    w_head = w_head.at[:, 3 * num_osc:3 * num_osc + 1].set(w_eps)
    b_head = jnp.zeros((1, P), jnp.float32).at[:, 3 * num_osc].set(b_eps)
    params["w_head"] = w_head
    params["b_head"] = b_head

    # frequency grid: matches np.arange(start, stop, step) element values,
    # lane-padded to a multiple of 128 by extrapolating the grid (padded lanes
    # are sliced off the T output in the wrapper).
    S = cfg["num_spec_points"]
    S_pad = _round_up(S, LANE)
    step = (cfg["freq_high"] - cfg["freq_low"]) / S
    w_freq = cfg["freq_low"] + step * np.arange(S_pad, dtype=np.float64)
    params["w_freq"] = jnp.asarray(w_freq, jnp.float32).reshape(1, -1)
    return params


if __name__ == "__main__":
    cfg = {
        "linear": [8, 32, 32],        # G has 8 geometry features, hidden=32
        "num_lorentz_osc": 4,
        "num_spec_points": 128,
        "freq_low": 0.5,
        "freq_high": 5.0,
        "normalize_input": True,
        "geoboundary": (30.0, 52.0),
        "use_lorentz": True,
    }
    B = 2

    key = jax.random.PRNGKey(0)
    k_g, k_p = jax.random.split(key)
    G = jax.random.uniform(k_g, (B, cfg["linear"][0]), jnp.float32, -1.0, 1.0)
    params = init_params(k_p, cfg)

    outs = forward(G, params, cfg)
    for o in outs:
        jax.block_until_ready(o)

    T, w0, wp, g, eps_inf, d = outs
    assert T.shape == (B, cfg["num_spec_points"])
    assert w0.shape == (B, cfg["num_lorentz_osc"])
    assert wp.shape == (B, cfg["num_lorentz_osc"])
    assert g.shape == (B, cfg["num_lorentz_osc"])
    assert eps_inf.shape == (B, 1)
    assert d.shape == (B,)
    assert bool(jnp.all(jnp.isfinite(T)))
    assert bool(jnp.all(jnp.isfinite(w0)))
    print("KERNEL_OK")
</pallas_src>

<mosaic_0001>
module attributes {stable_mosaic.version = 11 : i64} {
  func.func @kernel(%arg0: memref<8x8xf32, #tpu.memory_space<vmem>>, %arg1: memref<8x32xf32, #tpu.memory_space<vmem>>, %arg2: memref<2x32xf32, #tpu.memory_space<vmem>>, %arg3: memref<32x32xf32, #tpu.memory_space<vmem>>, %arg4: memref<2x32xf32, #tpu.memory_space<vmem>>, %arg5: memref<32x128xf32, #tpu.memory_space<vmem>>, %arg6: memref<1x128xf32, #tpu.memory_space<vmem>>, %arg7: memref<8x128xf32, #tpu.memory_space<vmem>>) attributes {dimension_semantics = [], scalar_prefetch = 0 : i64, scratch_operands = 0 : i64, tpu.core_type = #tpu.core_type<tc>} {
    %0 = tpu.iota {dimensions = array<i32: 0>} : vector<8x1xi32>
    %c2_i32 = arith.constant 2 : i32
    %1 = vector.broadcast %c2_i32 : i32 to vector<8x1xi32>
    %2 = arith.cmpi slt, %0, %1 : vector<8x1xi32>
    %3 = arith.extui %2 : vector<8x1xi1> to vector<8x1xi32>
    %4 = arith.sitofp %3 : vector<8x1xi32> to vector<8x1xf32>
    %c0 = arith.constant 0 : index
    %c0_0 = arith.constant 0 : index
    %5 = vector.load %arg0[%c0, %c0_0] : memref<8x8xf32, #tpu.memory_space<vmem>>, vector<8x8xf32>
    %c0_1 = arith.constant 0 : index
    %c0_2 = arith.constant 0 : index
    %6 = vector.load %arg1[%c0_1, %c0_2] : memref<8x32xf32, #tpu.memory_space<vmem>>, vector<8x32xf32>
    %c0_3 = arith.constant 0 : index
    %c0_4 = arith.constant 0 : index
    %7 = vector.load %arg2[%c0_3, %c0_4] : memref<2x32xf32, #tpu.memory_space<vmem>>, vector<2x32xf32>
    %8 = vector.extract_strided_slice %7 {offsets = [0, 0], sizes = [1, 32], strides = [1, 1]} : vector<2x32xf32> to vector<1x32xf32>
    %9 = vector.extract_strided_slice %7 {offsets = [1, 0], sizes = [1, 32], strides = [1, 1]} : vector<2x32xf32> to vector<1x32xf32>
    %cst = arith.constant dense<0.000000e+00> : vector<8x32xf32>
    %10 = tpu.matmul %5, %6, %cst {dimension_numbers = #tpu.dot_dimension_numbers<[1], [0], [0], [1], [0, 0, 1, 1], [], []>} : vector<8x8xf32>, vector<8x32xf32>, vector<8x32xf32> -> vector<8x32xf32>
    %11 = vector.broadcast %4 : vector<8x1xf32> to vector<8x32xf32>
    %12 = arith.mulf %10, %11 : vector<8x32xf32>
    %cst_5 = arith.constant dense<0.000000e+00> : vector<32xf32>
    %13 = vector.multi_reduction <add>, %12, %cst_5 [0] : vector<8x32xf32> to vector<32xf32>
    %14 = vector.shape_cast %13 : vector<32xf32> to vector<1x32xf32>
    %15 = arith.mulf %12, %10 : vector<8x32xf32>
    %cst_6 = arith.constant dense<0.000000e+00> : vector<32xf32>
    %16 = vector.multi_reduction <add>, %15, %cst_6 [0] : vector<8x32xf32> to vector<32xf32>
    %17 = vector.shape_cast %16 : vector<32xf32> to vector<1x32xf32>
    %cst_7 = arith.constant 5.000000e-01 : f32
    %18 = vector.broadcast %cst_7 : f32 to vector<1x32xf32>
    %19 = arith.mulf %14, %18 : vector<1x32xf32>
    %cst_8 = arith.constant 5.000000e-01 : f32
    %20 = vector.broadcast %cst_8 : f32 to vector<1x32xf32>
    %21 = arith.mulf %17, %20 : vector<1x32xf32>
    %22 = arith.mulf %19, %19 : vector<1x32xf32>
    %23 = arith.subf %21, %22 : vector<1x32xf32>
    %cst_9 = arith.constant 9.99999974E-6 : f32
    %24 = vector.broadcast %cst_9 : f32 to vector<1x32xf32>
    %25 = arith.addf %23, %24 : vector<1x32xf32>
    %26 = math.rsqrt %25 : vector<1x32xf32>
    %27 = arith.mulf %8, %26 : vector<1x32xf32>
    %28 = arith.mulf %19, %27 : vector<1x32xf32>
    %29 = arith.subf %9, %28 : vector<1x32xf32>
    %30 = vector.broadcast %27 : vector<1x32xf32> to vector<8x32xf32>
    %31 = arith.mulf %10, %30 : vector<8x32xf32>
    %32 = vector.broadcast %29 : vector<1x32xf32> to vector<8x32xf32>
    %33 = arith.addf %31, %32 : vector<8x32xf32>
    %cst_10 = arith.constant 0.000000e+00 : f32
    %34 = vector.broadcast %cst_10 : f32 to vector<8x32xf32>
    %35 = arith.maximumf %33, %34 : vector<8x32xf32>
    %c0_11 = arith.constant 0 : index
    %c0_12 = arith.constant 0 : index
    %36 = vector.load %arg3[%c0_11, %c0_12] : memref<32x32xf32, #tpu.memory_space<vmem>>, vector<32x32xf32>
    %c0_13 = arith.constant 0 : index
    %c0_14 = arith.constant 0 : index
    %37 = vector.load %arg4[%c0_13, %c0_14] : memref<2x32xf32, #tpu.memory_space<vmem>>, vector<2x32xf32>
    %38 = vector.extract_strided_slice %37 {offsets = [0, 0], sizes = [1, 32], strides = [1, 1]} : vector<2x32xf32> to vector<1x32xf32>
    %39 = vector.extract_strided_slice %37 {offsets = [1, 0], sizes = [1, 32], strides = [1, 1]} : vector<2x32xf32> to vector<1x32xf32>
    %cst_15 = arith.constant dense<0.000000e+00> : vector<8x32xf32>
    %40 = tpu.matmul %35, %36, %cst_15 {dimension_numbers = #tpu.dot_dimension_numbers<[1], [0], [0], [1], [0, 0, 1, 1], [], []>} : vector<8x32xf32>, vector<32x32xf32>, vector<8x32xf32> -> vector<8x32xf32>
    %41 = vector.broadcast %4 : vector<8x1xf32> to vector<8x32xf32>
    %42 = arith.mulf %40, %41 : vector<8x32xf32>
    %cst_16 = arith.constant dense<0.000000e+00> : vector<32xf32>
    %43 = vector.multi_reduction <add>, %42, %cst_16 [0] : vector<8x32xf32> to vector<32xf32>
    %44 = vector.shape_cast %43 : vector<32xf32> to vector<1x32xf32>
    %45 = arith.mulf %42, %40 : vector<8x32xf32>
    %cst_17 = arith.constant dense<0.000000e+00> : vector<32xf32>
    %46 = vector.multi_reduction <add>, %45, %cst_17 [0] : vector<8x32xf32> to vector<32xf32>
    %47 = vector.shape_cast %46 : vector<32xf32> to vector<1x32xf32>
    %cst_18 = arith.constant 5.000000e-01 : f32
    %48 = vector.broadcast %cst_18 : f32 to vector<1x32xf32>
    %49 = arith.mulf %44, %48 : vector<1x32xf32>
    %cst_19 = arith.constant 5.000000e-01 : f32
    %50 = vector.broadcast %cst_19 : f32 to vector<1x32xf32>
    %51 = arith.mulf %47, %50 : vector<1x32xf32>
    %52 = arith.mulf %49, %49 : vector<1x32xf32>
    %53 = arith.subf %51, %52 : vector<1x32xf32>
    %cst_20 = arith.constant 9.99999974E-6 : f32
    %54 = vector.broadcast %cst_20 : f32 to vector<1x32xf32>
    %55 = arith.addf %53, %54 : vector<1x32xf32>
    %56 = math.rsqrt %55 : vector<1x32xf32>
    %57 = arith.mulf %38, %56 : vector<1x32xf32>
    %58 = arith.mulf %49, %57 : vector<1x32xf32>
    %59 = arith.subf %39, %58 : vector<1x32xf32>
    %60 = vector.broadcast %57 : vector<1x32xf32> to vector<8x32xf32>
    %61 = arith.mulf %40, %60 : vector<8x32xf32>
    %62 = vector.broadcast %59 : vector<1x32xf32> to vector<8x32xf32>
    %63 = arith.addf %61, %62 : vector<8x32xf32>
    %cst_21 = arith.constant 0.000000e+00 : f32
    %64 = vector.broadcast %cst_21 : f32 to vector<8x32xf32>
    %65 = arith.maximumf %63, %64 : vector<8x32xf32>
    %c0_22 = arith.constant 0 : index
    %c0_23 = arith.constant 0 : index
    %66 = vector.load %arg5[%c0_22, %c0_23] : memref<32x128xf32, #tpu.memory_space<vmem>>, vector<32x128xf32>
    %cst_24 = arith.constant dense<0.000000e+00> : vector<8x128xf32>
    %67 = tpu.matmul %65, %66, %cst_24 {dimension_numbers = #tpu.dot_dimension_numbers<[1], [0], [0], [1], [0, 0, 1, 1], [], []>} : vector<8x32xf32>, vector<32x128xf32>, vector<8x128xf32> -> vector<8x128xf32>
    %c0_25 = arith.constant 0 : index
    %c0_26 = arith.constant 0 : index
    %68 = vector.load %arg6[%c0_25, %c0_26] : memref<1x128xf32, #tpu.memory_space<vmem>>, vector<1x128xf32>
    %69 = vector.broadcast %68 : vector<1x128xf32> to vector<8x128xf32>
    %70 = arith.addf %67, %69 : vector<8x128xf32>
    %cst_27 = arith.constant 0.000000e+00 : f32
    %71 = vector.broadcast %cst_27 : f32 to vector<8x128xf32>
    %72 = arith.maximumf %70, %71 : vector<8x128xf32>
    %c0_28 = arith.constant 0 : index
    %c0_29 = arith.constant 0 : index
    %73 = vector.load %arg0[%c0_28, %c0_29] : memref<8x8xf32, #tpu.memory_space<vmem>>, vector<8x4xf32>
    %cst_30 = arith.constant dense<0.000000e+00> : vector<8xf32>
    %74 = vector.multi_reduction <add>, %73, %cst_30 [1] : vector<8x4xf32> to vector<8xf32>
    %75 = vector.shape_cast %74 : vector<8xf32> to vector<8x1xf32>
    %cst_31 = arith.constant 4.000000e+00 : f32
    %76 = vector.broadcast %cst_31 : f32 to vector<8x1xf32>
    %77 = arith.divf %75, %76 : vector<8x1xf32>
    %cst_32 = arith.constant 5.000000e-01 : f32
    %78 = vector.broadcast %cst_32 : f32 to vector<8x1xf32>
    %79 = arith.mulf %77, %78 : vector<8x1xf32>
    %cst_33 = arith.constant 2.200000e+01 : f32
    %80 = vector.broadcast %cst_33 : f32 to vector<8x1xf32>
    %81 = arith.mulf %79, %80 : vector<8x1xf32>
    %cst_34 = arith.constant 4.100000e+01 : f32
    %82 = vector.broadcast %cst_34 : f32 to vector<8x1xf32>
    %83 = arith.addf %81, %82 : vector<8x1xf32>
    %84 = tpu.iota {dimensions = array<i32: 1>} : vector<8x128xi32>
    %c13_i32 = arith.constant 13 : i32
    %85 = vector.broadcast %c13_i32 : i32 to vector<8x128xi32>
    %86 = arith.cmpi eq, %84, %85 : vector<8x128xi32>
    %87 = vector.shape_cast %83 : vector<8x1xf32> to vector<8x1xf32>
    %88 = vector.broadcast %87 : vector<8x1xf32> to vector<8x128xf32>
    %89 = arith.select %86, %88, %72 : vector<8x128xi1>, vector<8x128xf32>
    %c0_35 = arith.constant 0 : index
    %c0_36 = arith.constant 0 : index
    %90 = vector.load %arg7[%c0_35, %c0_36] : memref<8x128xf32, #tpu.memory_space<vmem>>, vector<8x128xf32>
    tpu.vector_store %arg7[%c0_35, %c0_36], %89 {strides = array<i32>} : memref<8x128xf32, #tpu.memory_space<vmem>>, vector<8x128xf32>,
    return
  }
}

</mosaic_0001>

<llo_original>
// kernel: tpu_custom_call.1
$region0: #{tpu_custom_call.1}
  #allocation0 [shape = 'u32[]', space=smem, size = 0x4, offset = 0x4, fixed_abs, tag = 'smem constant byte address 0x4 - core index']
  #allocation1 [shape = 'u32[144,128]{1,0:T(1,128)}', space=vmem, size = 0x12000, scoped, tag = 'internal scratch']
  %s0 = inlined_call_operand.hbm [shape: f32[8,8], index: 0, kind: input, shape index: {}]
  %s1 = inlined_call_operand.hbm [shape: f32[8,32], index: 1, kind: input, shape index: {}]
  %s2 = inlined_call_operand.vmem [shape: f32[2,32], index: 2, kind: input, shape index: {}]
  %s3 = inlined_call_operand.hbm [shape: f32[32,32], index: 3, kind: input, shape index: {}]
  %s4 = inlined_call_operand.vmem [shape: f32[2,32], index: 4, kind: input, shape index: {}]
  %s5 = inlined_call_operand.hbm [shape: f32[32,128], index: 5, kind: input, shape index: {}]
  %s6 = inlined_call_operand.vmem [shape: f32[1,128], index: 6, kind: input, shape index: {}]
  %s7 = inlined_call_operand.hbm [shape: f32[8,128], index: 7, kind: output, shape index: {}]
  %s8 = sld [smem:[#allocation0]]
  $region54: #{tpu_custom_call.1} parent=0
    _
  %s10 = ssub.s32 1, %s8
  %s11 = scalar_select 0, %s10, %s8
  $region1: #{tpu_custom_call.1} parent=0
    #allocation2 [shape = 'u8[4096]{0}', space=vmem, size = 0x1000, scoped, tag = 'input window, operand 0, single buffered']
    #allocation3 [shape = 's32[1]{0}', space=sflag, size = 0x4, scoped, tag = 'scoped memory for tpu_custom_call.1']
    #allocation4 [shape = 's32[1]{0}', space=sflag, size = 0x4, scoped, tag = 'scoped memory for tpu_custom_call.1']
    #allocation5 [shape = 'u8[4096]{0}', space=vmem, size = 0x1000, scoped, tag = 'input window, operand 1, single buffered']
    #allocation6 [shape = 's32[1]{0}', space=sflag, size = 0x4, scoped, tag = 'scoped memory for tpu_custom_call.1']
    #allocation7 [shape = 'u8[16384]{0}', space=vmem, size = 0x4000, scoped, tag = 'input window, operand 3, single buffered']
    #allocation8 [shape = 'u8[16384]{0}', space=vmem, size = 0x4000, scoped, tag = 'input window, operand 5, single buffered']
    #allocation9 [shape = 's32[1]{0}', space=sflag, size = 0x4, scoped, tag = 'scoped memory for tpu_custom_call.1']
    #allocation10 [shape = 'u8[4096]{0}', space=vmem, size = 0x1000, scoped, tag = 'output window, operand 0, single buffered']
    %12 = vsyncpa [#allocation3], 0
    %13 = vsyncpa [#allocation6], 0
    %14 = vsyncpa [#allocation9], 0
    %15 = vsyncpa [#allocation4], 0
    // Predicated region
    $region2: #{tpu_custom_call.1} parent=1 // pred_check
      _
    $region3: #{tpu_custom_call.1} parent=1 // pred_check_branch
      %17 = sbr.rel (0) target = $region5
    $region4: #{tpu_custom_call.1} parent=1 // pred_region
      %s19 = ssub.s32 128, 128
      %20 = vsyncadd [#allocation3], %s19
      %s22 = sshll.u32 [#allocation2], 4
      %s23 = int_to_ptr.vmem [resolvable:$true] %s22
      %25 = dma.hbm_to_vmem [thread:$0]  %s0, 128, %s23, [#allocation3]
    $region5: #{tpu_custom_call.1} parent=1 // pred_fallthru
      _
    // Predicated region
    $region6: #{tpu_custom_call.1} parent=1 // pred_check
      _
    $region7: #{tpu_custom_call.1} parent=1 // pred_check_branch
      %27 = sbr.rel (0) target = $region9
    $region8: #{tpu_custom_call.1} parent=1 // pred_region
      %s29 = ssub.s32 128, 128
      %30 = vsyncadd [#allocation6], %s29
      %s32 = sshll.u32 [#allocation5], 4
      %s33 = int_to_ptr.vmem [resolvable:$true] %s32
      %35 = dma.hbm_to_vmem [thread:$0]  %s1, 128, %s33, [#allocation6]
    $region9: #{tpu_custom_call.1} parent=1 // pred_fallthru
      _
    // Predicated region
    $region10: #{tpu_custom_call.1} parent=1 // pred_check
      _
    $region11: #{tpu_custom_call.1} parent=1 // pred_check_branch
      %37 = sbr.rel (0) target = $region13
    $region12: #{tpu_custom_call.1} parent=1 // pred_region
      _
    $region13: #{tpu_custom_call.1} parent=1 // pred_fallthru
      _
    // Predicated region
    $region14: #{tpu_custom_call.1} parent=1 // pred_check
      _
    $region15: #{tpu_custom_call.1} parent=1 // pred_check_branch
      %39 = sbr.rel (0) target = $region17
    $region16: #{tpu_custom_call.1} parent=1 // pred_region
      %s41 = ssub.s32 512, 512
      %42 = vsyncadd [#allocation6], %s41
      %s43 = sshll.u32 [#allocation7], 4
      %s44 = int_to_ptr.vmem [resolvable:$true] %s43
      %49 = dma.hbm_to_vmem [thread:$0]  %s3, 512, %s44, [#allocation6], 128, 128, 8
    $region17: #{tpu_custom_call.1} parent=1 // pred_fallthru
      _
    // Predicated region
    $region18: #{tpu_custom_call.1} parent=1 // pred_check
      _
    $region19: #{tpu_custom_call.1} parent=1 // pred_check_branch
      %51 = sbr.rel (0) target = $region21
    $region20: #{tpu_custom_call.1} parent=1 // pred_region
      _
    $region21: #{tpu_custom_call.1} parent=1 // pred_fallthru
      _
    // Predicated region
    $region22: #{tpu_custom_call.1} parent=1 // pred_check
      _
    $region23: #{tpu_custom_call.1} parent=1 // pred_check_branch
      %53 = sbr.rel (0) target = $region25
    $region24: #{tpu_custom_call.1} parent=1 // pred_region
      %s55 = ssub.s32 512, 512
      %56 = vsyncadd [#allocation9], %s55
      %s57 = sshll.u32 [#allocation8], 4
      %s58 = int_to_ptr.vmem [resolvable:$true] %s57
      %63 = dma.hbm_to_vmem [thread:$0]  %s5, 512, %s58, [#allocation9], 128, 128, 8
    $region25: #{tpu_custom_call.1} parent=1 // pred_fallthru
      _
    // Predicated region
    $region26: #{tpu_custom_call.1} parent=1 // pred_check
      _
    $region27: #{tpu_custom_call.1} parent=1 // pred_check_branch
      %65 = sbr.rel (0) target = $region29
    $region28: #{tpu_custom_call.1} parent=1 // pred_region
      _
    $region29: #{tpu_custom_call.1} parent=1 // pred_fallthru
      _
    // Predicated region
    $region30: #{tpu_custom_call.1} parent=1 // pred_check
      _
    $region31: #{tpu_custom_call.1} parent=1 // pred_check_branch
      %67 = sbr.rel (0) target = $region33
    $region32: #{tpu_custom_call.1} parent=1 // pred_region
      %68 = dma.done [#allocation3], 128
    $region33: #{tpu_custom_call.1} parent=1 // pred_fallthru
      _
    // Predicated region
    $region34: #{tpu_custom_call.1} parent=1 // pred_check
      _
    $region35: #{tpu_custom_call.1} parent=1 // pred_check_branch
      %70 = sbr.rel (0) target = $region37
    $region36: #{tpu_custom_call.1} parent=1 // pred_region
      %71 = dma.done [#allocation6], 128
    $region37: #{tpu_custom_call.1} parent=1 // pred_fallthru
      _
    // Predicated region
    $region38: #{tpu_custom_call.1} parent=1 // pred_check
      _
    $region39: #{tpu_custom_call.1} parent=1 // pred_check_branch
      %73 = sbr.rel (0) target = $region41
    $region40: #{tpu_custom_call.1} parent=1 // pred_region
      %74 = dma.done [#allocation6], 512
    $region41: #{tpu_custom_call.1} parent=1 // pred_fallthru
      _
    // Predicated region
    $region42: #{tpu_custom_call.1} parent=1 // pred_check
      _
    $region43: #{tpu_custom_call.1} parent=1 // pred_check_branch
      %76 = sbr.rel (0) target = $region45
    $region44: #{tpu_custom_call.1} parent=1 // pred_region
      %77 = dma.done [#allocation9], 512
    $region45: #{tpu_custom_call.1} parent=1 // pred_fallthru
      _
    %v78 = vlaneseq
    %v79 = vshrl.u32 %v78, 7
    %vm80 = vcmp.lt.s32.totalorder %v79, 2
    %v81 = vsel %vm80, 1, 0
    %v82 = vcvt.s32.f32 %v81
    %v83 = vld [vmem:[#allocation2] sm:$0xff]
    %v84 = vld [vmem:[#allocation5] sm:$0xff]
    %v85 = vld [vmem:[%s2] sm:$0x3]
    %vm86 = vcmask 64512
    %v88 = vsel %vm86, %v83, 0
    %90 = vmatprep.subr.mxu0 0.0
    %91 = vmatpush1.msra.mxu0 %v84
    %92 = vmatprep.subr.mxu0 0.0
    %93 = vmatpush1.msra.mxu0 0.0
    %94 = vmatprep.subr.mxu0 0.0
    %95 = vmatpush1.msra.mxu0 0.0
    %96 = vmatprep.subr.mxu0 0.0
    %97 = vmatpush1.msra.mxu0 0.0
    %98 = vmatprep.subr.mxu0 0.0
    %99 = vmatpush1.msra.mxu0 0.0
    %100 = vmatprep.subr.mxu0 0.0
    %101 = vmatpush1.msra.mxu0 0.0
    %102 = vmatprep.subr.mxu0 0.0
    %103 = vmatpush1.msra.mxu0 0.0
    %104 = vmatprep.subr.mxu0 0.0
    %105 = vmatpush1.msra.mxu0 0.0
    %106 = vmatprep.subr.mxu0 0.0
    %107 = vmatpush1.msra.mxu0 0.0
    %108 = vmatprep.subr.mxu0 0.0
    %109 = vmatpush1.msra.mxu0 0.0
    %110 = vmatprep.subr.mxu0 0.0
    %111 = vmatpush1.msra.mxu0 0.0
    %112 = vmatprep.subr.mxu0 0.0
    %113 = vmatpush1.msra.mxu0 0.0
    %114 = vmatprep.subr.mxu0 0.0
    %115 = vmatpush1.msra.mxu0 0.0
    %116 = vmatprep.subr.mxu0 0.0
    %117 = vmatpush1.msra.mxu0 0.0
    %118 = vmatprep.subr.mxu0 0.0
    %119 = vmatpush1.msra.mxu0 0.0
    %120 = vmatprep.subr.mxu0 0.0
    %121 = vmatpush1.msra.mxu0 0.0
    %122 = vmatprep.subr.mxu0 0.0
    %123 = vmatpush1.msra.mxu0 0.0
    %124 = vmatprep.subr.mxu0 0.0
    %125 = vmatpush1.msra.mxu0 0.0
    %126 = vmatprep.subr.mxu0 0.0
    %127 = vmatpush1.msra.mxu0 0.0
    %128 = vmatprep.subr.mxu0 0.0
    %129 = vmatpush1.msra.mxu0 0.0
    %130 = vmatprep.subr.mxu0 0.0
    %131 = vmatpush1.msra.mxu0 0.0
    %132 = vmatprep.subr.mxu0 0.0
    %133 = vmatpush1.msra.mxu0 0.0
    %134 = vmatprep.subr.mxu0 0.0
    %135 = vmatpush1.msra.mxu0 0.0
    %136 = vmatprep.subr.mxu0 0.0
    %137 = vmatpush1.msra.mxu0 0.0
    %138 = vmatprep.subr.mxu0 0.0
    %139 = vmatpush1.msra.mxu0 0.0
    %140 = vmatprep.subr.mxu0 0.0
    %141 = vmatpush1.msra.mxu0 0.0
    %142 = vmatprep.subr.mxu0 0.0
    %143 = vmatpush1.msra.mxu0 0.0
    %144 = vmatprep.subr.mxu0 0.0
    %145 = vmatpush1.msra.mxu0 0.0
    %146 = vmatprep.subr.mxu0 0.0
    %147 = vmatpush1.msra.mxu0 0.0
    %148 = vmatprep.subr.mxu0 0.0
    %149 = vmatpush1.msra.mxu0 0.0
    %150 = vmatprep.subr.mxu0 0.0
    %151 = vmatpush1.msra.mxu0 0.0
    %152 = vmatprep.subr.mxu0 0.0
    %153 = vmatpush1.msra.mxu0 0.0
    %154 = vmatprep.mubr.f32.mxu0 0.0
    %155 = vmatmul.mubr.f32.gmra.mrb[0].mxu0 %v88
    %v156 = vpop.f32.mrb[0].mxu0
    %v157 = vadd.f32 0.0, %v156
    %v158 = vpop.f32.mrb[0].mxu0
    %159 = vdwg.mxu0
    %v160 = vmul.f32 %v157, %v82
    %vm161 = vcmask 261120
    %v162 = vsel %vm161, %v160, 0.0
    %v163 = vrot.slane %v162, 4
    %v164 = vadd.f32 %v162, %v163
    %v165 = vrot.slane %v164, 2
    %v166 = vadd.f32 %v164, %v165
    %v167 = vrot.slane %v166, 1
    %v168 = vadd.f32 %v166, %v167
    %v169 = vmul.f32 %v160, %v157
    %v170 = vsel %vm161, %v169, 0.0
    %v171 = vrot.slane %v170, 4
    %v172 = vadd.f32 %v170, %v171
    %v173 = vrot.slane %v172, 2
    %v174 = vadd.f32 %v172, %v173
    %v175 = vrot.slane %v174, 1
    %v176 = vadd.f32 %v174, %v175
    %v177 = vmul.f32 %v168, 0.5
    %v178 = vmul.f32 %v176, 0.5
    %v179 = vmul.f32 %v177, %v177
    %v180 = vsub.f32 %v178, %v179
    %v181 = vadd.f32 %v180, 1e-05
    %v182 = vrsqrt.pop %v181
    %v183 = vmul.f32 %v85, %v182
    %v184 = vmul.f32 %v177, %v183
    %v186 = vrot.slane %v184, 7
    %v188 = vsub.f32 %v85, %v186
    %v189 = vlaneseq
    %v190 = vshrl.u32 %v189, 7
    %v191 = vsub.s32 0, %v190
    %v192 = vrot.slane %v183, %v191
    %v193 = vmul.f32 %v157, %v192
    %v194 = vlaneseq
    %v195 = vshrl.u32 %v194, 7
    %v196 = vsub.s32 1, %v195
    %v197 = vrot.slane %v188, %v196
    %v198 = vadd.f32 %v193, %v197
    %v199 = vmax.f32 %v198, 0.0
    %v200 = vld [vmem:[#allocation7] sm:$0xff]
    %v201 = vld [vmem:[#allocation7 + $0x8] sm:$0xff]
    %v202 = vld [vmem:[#allocation7 + $0x10] sm:$0xff]
    %v203 = vld [vmem:[#allocation7 + $0x18] sm:$0xff]
    %v204 = vld [vmem:[%s4] sm:$0x3]
    %v206 = vsel %vm161, %v199, 0
    %208 = vmatprep.subr.mxu0 0.0
    %209 = vmatpush1.msra.mxu0 %v200
    %210 = vmatprep.subr.mxu0 0.0
    %211 = vmatpush1.msra.mxu0 %v201
    %212 = vmatprep.subr.mxu0 0.0
    %213 = vmatpush1.msra.mxu0 %v202
    %214 = vmatprep.subr.mxu0 0.0
    %215 = vmatpush1.msra.mxu0 %v203
    %216 = vmatprep.subr.mxu0 0.0
    %217 = vmatpush1.msra.mxu0 0.0
    %218 = vmatprep.subr.mxu0 0.0
    %219 = vmatpush1.msra.mxu0 0.0
    %220 = vmatprep.subr.mxu0 0.0
    %221 = vmatpush1.msra.mxu0 0.0
    %222 = vmatprep.subr.mxu0 0.0
    %223 = vmatpush1.msra.mxu0 0.0
    %224 = vmatprep.subr.mxu0 0.0
    %225 = vmatpush1.msra.mxu0 0.0
    %226 = vmatprep.subr.mxu0 0.0
    %227 = vmatpush1.msra.mxu0 0.0
    %228 = vmatprep.subr.mxu0 0.0
    %229 = vmatpush1.msra.mxu0 0.0
    %230 = vmatprep.subr.mxu0 0.0
    %231 = vmatpush1.msra.mxu0 0.0
    %232 = vmatprep.subr.mxu0 0.0
    %233 = vmatpush1.msra.mxu0 0.0
    %234 = vmatprep.subr.mxu0 0.0
    %235 = vmatpush1.msra.mxu0 0.0
    %236 = vmatprep.subr.mxu0 0.0
    %237 = vmatpush1.msra.mxu0 0.0
    %238 = vmatprep.subr.mxu0 0.0
    %239 = vmatpush1.msra.mxu0 0.0
    %240 = vmatprep.subr.mxu0 0.0
    %241 = vmatpush1.msra.mxu0 0.0
    %242 = vmatprep.subr.mxu0 0.0
    %243 = vmatpush1.msra.mxu0 0.0
    %244 = vmatprep.subr.mxu0 0.0
    %245 = vmatpush1.msra.mxu0 0.0
    %246 = vmatprep.subr.mxu0 0.0
    %247 = vmatpush1.msra.mxu0 0.0
    %248 = vmatprep.subr.mxu0 0.0
    %249 = vmatpush1.msra.mxu0 0.0
    %250 = vmatprep.subr.mxu0 0.0
    %251 = vmatpush1.msra.mxu0 0.0
    %252 = vmatprep.subr.mxu0 0.0
    %253 = vmatpush1.msra.mxu0 0.0
    %254 = vmatprep.subr.mxu0 0.0
    %255 = vmatpush1.msra.mxu0 0.0
    %256 = vmatprep.subr.mxu0 0.0
    %257 = vmatpush1.msra.mxu0 0.0
    %258 = vmatprep.subr.mxu0 0.0
    %259 = vmatpush1.msra.mxu0 0.0
    %260 = vmatprep.subr.mxu0 0.0
    %261 = vmatpush1.msra.mxu0 0.0
    %262 = vmatprep.subr.mxu0 0.0
    %263 = vmatpush1.msra.mxu0 0.0
    %264 = vmatprep.subr.mxu0 0.0
    %265 = vmatpush1.msra.mxu0 0.0
    %266 = vmatprep.subr.mxu0 0.0
    %267 = vmatpush1.msra.mxu0 0.0
    %268 = vmatprep.subr.mxu0 0.0
    %269 = vmatpush1.msra.mxu0 0.0
    %270 = vmatprep.subr.mxu0 0.0
    %271 = vmatpush1.msra.mxu0 0.0
    %272 = vmatprep.mubr.f32.mxu0 0.0
    %273 = vmatmul.mubr.f32.gmra.mrb[0].mxu0 %v206
    %v274 = vpop.f32.mrb[0].mxu0
    %v275 = vadd.f32 0.0, %v274
    %v276 = vpop.f32.mrb[0].mxu0
    %277 = vdwg.mxu0
    %v278 = vmul.f32 %v275, %v82
    %v279 = vsel %vm161, %v278, 0.0
    %v280 = vrot.slane %v279, 4
    %v281 = vadd.f32 %v279, %v280
    %v282 = vrot.slane %v281, 2
    %v283 = vadd.f32 %v281, %v282
    %v284 = vrot.slane %v283, 1
    %v285 = vadd.f32 %v283, %v284
    %v286 = vmul.f32 %v278, %v275
    %v287 = vsel %vm161, %v286, 0.0
    %v288 = vrot.slane %v287, 4
    %v289 = vadd.f32 %v287, %v288
    %v290 = vrot.slane %v289, 2
    %v291 = vadd.f32 %v289, %v290
    %v292 = vrot.slane %v291, 1
    %v293 = vadd.f32 %v291, %v292
    %v294 = vmul.f32 %v285, 0.5
    %v295 = vmul.f32 %v293, 0.5
    %v296 = vmul.f32 %v294, %v294
    %v297 = vsub.f32 %v295, %v296
    %v298 = vadd.f32 %v297, 1e-05
    %v299 = vrsqrt.pop %v298
    %v300 = vmul.f32 %v204, %v299
    %v301 = vmul.f32 %v294, %v300
    %v303 = vrot.slane %v301, 7
    %v305 = vsub.f32 %v204, %v303
    %v306 = vlaneseq
    %v307 = vshrl.u32 %v306, 7
    %v308 = vsub.s32 0, %v307
    %v309 = vrot.slane %v300, %v308
    %v310 = vmul.f32 %v275, %v309
    %v311 = vlaneseq
    %v312 = vshrl.u32 %v311, 7
    %v313 = vsub.s32 1, %v312
    %v314 = vrot.slane %v305, %v313
    %v315 = vadd.f32 %v310, %v314
    %v316 = vmax.f32 %v315, 0.0
    %v317 = vld [vmem:[#allocation8] sm:$0xff]
    %v318 = vld [vmem:[#allocation8 + $0x8] sm:$0xff]
    %v319 = vld [vmem:[#allocation8 + $0x10] sm:$0xff]
    %v320 = vld [vmem:[#allocation8 + $0x18] sm:$0xff]
    %v321 = vld [vmem:[%s6] sm:$0x1]
    %v323 = vlaneseq
    %v324 = vshrl.u32 %v323, 7
    %v325 = vsub.s32 0, %v324
    %v326 = vrot.slane %v321, %v325
    %v329 = vsel %vm161, %v316, 0
    %331 = vmatprep.subr.mxu0 0.0
    %332 = vmatpush1.msra.mxu0 %v317
    %333 = vmatprep.subr.mxu0 0.0
    %334 = vmatpush1.msra.mxu0 %v318
    %335 = vmatprep.subr.mxu0 0.0
    %336 = vmatpush1.msra.mxu0 %v319
    %337 = vmatprep.subr.mxu0 0.0
    %338 = vmatpush1.msra.mxu0 %v320
    %339 = vmatprep.subr.mxu0 0.0
    %340 = vmatpush1.msra.mxu0 0.0
    %341 = vmatprep.subr.mxu0 0.0
    %342 = vmatpush1.msra.mxu0 0.0
    %343 = vmatprep.subr.mxu0 0.0
    %344 = vmatpush1.msra.mxu0 0.0
    %345 = vmatprep.subr.mxu0 0.0
    %346 = vmatpush1.msra.mxu0 0.0
    %347 = vmatprep.subr.mxu0 0.0
    %348 = vmatpush1.msra.mxu0 0.0
    %349 = vmatprep.subr.mxu0 0.0
    %350 = vmatpush1.msra.mxu0 0.0
    %351 = vmatprep.subr.mxu0 0.0
    %352 = vmatpush1.msra.mxu0 0.0
    %353 = vmatprep.subr.mxu0 0.0
    %354 = vmatpush1.msra.mxu0 0.0
    %355 = vmatprep.subr.mxu0 0.0
    %356 = vmatpush1.msra.mxu0 0.0
    %357 = vmatprep.subr.mxu0 0.0
    %358 = vmatpush1.msra.mxu0 0.0
    %359 = vmatprep.subr.mxu0 0.0
    %360 = vmatpush1.msra.mxu0 0.0
    %361 = vmatprep.subr.mxu0 0.0
    %362 = vmatpush1.msra.mxu0 0.0
    %363 = vmatprep.subr.mxu0 0.0
    %364 = vmatpush1.msra.mxu0 0.0
    %365 = vmatprep.subr.mxu0 0.0
    %366 = vmatpush1.msra.mxu0 0.0
    %367 = vmatprep.subr.mxu0 0.0
    %368 = vmatpush1.msra.mxu0 0.0
    %369 = vmatprep.subr.mxu0 0.0
    %370 = vmatpush1.msra.mxu0 0.0
    %371 = vmatprep.subr.mxu0 0.0
    %372 = vmatpush1.msra.mxu0 0.0
    %373 = vmatprep.subr.mxu0 0.0
    %374 = vmatpush1.msra.mxu0 0.0
    %375 = vmatprep.subr.mxu0 0.0
    %376 = vmatpush1.msra.mxu0 0.0
    %377 = vmatprep.subr.mxu0 0.0
    %378 = vmatpush1.msra.mxu0 0.0
    %379 = vmatprep.subr.mxu0 0.0
    %380 = vmatpush1.msra.mxu0 0.0
    %381 = vmatprep.subr.mxu0 0.0
    %382 = vmatpush1.msra.mxu0 0.0
    %383 = vmatprep.subr.mxu0 0.0
    %384 = vmatpush1.msra.mxu0 0.0
    %385 = vmatprep.subr.mxu0 0.0
    %386 = vmatpush1.msra.mxu0 0.0
    %387 = vmatprep.subr.mxu0 0.0
    %388 = vmatpush1.msra.mxu0 0.0
    %389 = vmatprep.subr.mxu0 0.0
    %390 = vmatpush1.msra.mxu0 0.0
    %391 = vmatprep.subr.mxu0 0.0
    %392 = vmatpush1.msra.mxu0 0.0
    %393 = vmatprep.subr.mxu0 0.0
    %394 = vmatpush1.msra.mxu0 0.0
    %395 = vmatprep.mubr.f32.mxu0 0.0
    %396 = vmatmul.mubr.f32.gmra.mrb[0].mxu0 %v329
    %v397 = vpop.f32.mrb[0].mxu0
    %v398 = vadd.f32 %v326, %v397
    %v399 = vpop.f32.mrb[0].mxu0
    %400 = vdwg.mxu0
    %v401 = vmax.f32 %v398, 0.0
    %vm402 = vcmask 31744
    %v403 = vsel %vm402, %v83, 0.0
    %404 = vadd.xlane.f32.xlu0 %v403
    %v405 = vpop.xlane.xlu0 %404
    %v406 = vrcp.pop 4.0
    %v407 = vmul.f32 %v405, %v406
    %v408 = vmul.f32 %v407, 0.5
    %v409 = vmul.f32 %v408, 22.0
    %v410 = vadd.f32 %v409, 41.0
    %v411 = vlaneseq
    %v412 = vand.u32 %v411, 127
    %vm413 = vcmp.eq.s32.totalorder %v412, 13
    %v414 = vsel %vm413, %v410, %v401
    %415 = vst [vmem:[#allocation10] sm:$0xff] %v414
    // Predicated region
    $region46: #{tpu_custom_call.1} parent=1 // pred_check
      _
    $region47: #{tpu_custom_call.1} parent=1 // pred_check_branch
      %417 = sbr.rel (0) target = $region49
    $region48: #{tpu_custom_call.1} parent=1 // pred_region
      %s419 = ssub.s32 128, 128
      %420 = vsyncadd [#allocation4], %s419
      %s422 = sshll.u32 [#allocation10], 4
      %s423 = int_to_ptr.vmem [resolvable:$true] %s422
      %425 = dma.vmem_to_hbm [thread:$0]  %s423, 128, %s7, [#allocation4]
    $region49: #{tpu_custom_call.1} parent=1 // pred_fallthru
      _
    // Predicated region
    $region50: #{tpu_custom_call.1} parent=1 // pred_check
      _
    $region51: #{tpu_custom_call.1} parent=1 // pred_check_branch
      %427 = sbr.rel (0) target = $region53
    $region52: #{tpu_custom_call.1} parent=1 // pred_region
      %428 = dma.done [#allocation4], 128
    $region53: #{tpu_custom_call.1} parent=1 // pred_fallthru
      _
    %429 = vsyncpa [#allocation3], 1
    %430 = vsyncpa [#allocation6], 1
    %431 = vsyncpa [#allocation9], 1
    %432 = vsyncpa [#allocation4], 1

</llo_original>
